<compile_context>
chip_gen: v6e
topology: v6e:2x2x1
jax: 0.10.0
libtpu: 0.0.40
codegen_flags: <defaults>
</compile_context>

<pallas_src>
import numpy as np
import jax
import jax.numpy as jnp
from jax.experimental import pallas as pl
from jax.experimental.pallas import tpu as pltpu

# ----------------------- STFT configuration (small test sizes) ---------------
FILTER_LENGTH = 256
HOP_LENGTH = 64
WIN_LENGTH = 256
WINDOW = "hann"


def _round_up(x, m):
    return (x + m - 1) // m * m


# ----------------------- deterministic basis / window setup ------------------
def hann_window(win_length, fftbins=True):
    # == scipy.signal.get_window('hann', win_length, fftbins=True)
    n = np.arange(win_length)
    denom = win_length if fftbins else win_length - 1
    return 0.5 - 0.5 * np.cos(2.0 * np.pi * n / denom)


def pad_center(w, size):
    n = len(w)
    lpad = (size - n) // 2
    return np.pad(w, (lpad, size - n - lpad))


def window_sumsquare(n_frames, hop, win_length, n_fft):
    # librosa-style window_sumsquare (norm=None) used by STFT.inverse
    n = n_fft + hop * (n_frames - 1)
    x = np.zeros(n, dtype=np.float32)
    win_sq = pad_center(hann_window(win_length) ** 2, n_fft)
    for i in range(n_frames):
        s = i * hop
        x[s:min(n, s + n_fft)] += win_sq[:max(0, min(n_fft, n - s))]
    return x


def build_bases(filter_length, hop, win_length, window):
    scale = filter_length / hop
    fourier_basis = np.fft.fft(np.eye(filter_length))
    cutoff = filter_length // 2 + 1
    fourier_basis = np.vstack(
        [np.real(fourier_basis[:cutoff, :]), np.imag(fourier_basis[:cutoff, :])]
    )
    forward_basis = fourier_basis.astype(np.float32)                              # (2C, F)
    inverse_basis = np.linalg.pinv(scale * fourier_basis).T.astype(np.float32)    # (2C, F)
    if window is not None:
        assert filter_length >= win_length
        fft_window = pad_center(hann_window(win_length, fftbins=True),
                                filter_length).astype(np.float32)
        forward_basis = forward_basis * fft_window[None, :]
        inverse_basis = inverse_basis * fft_window[None, :]
    return forward_basis, inverse_basis, cutoff


# ----------------------- fused Pallas kernel ---------------------------------
def _make_stft_recon_call(B, S, T_pad, tile_t, hop, filt_len):
    n_tiles = T_pad // tile_t
    k_frames = filt_len // hop
    halo = S - T_pad                  # spare rows past the last tile
    L = tile_t + halo                 # chunk rows loaded per tile
    assert L >= tile_t + k_frames - 1

    def kernel(audio_ref, w_ref, out_ref, x_ref):
        # audio_ref: (1, S, hop)            padded audio, resident per batch row
        # w_ref:     (filt_len, filt_len)   composed forward.T @ inverse basis
        # out_ref:   (1, tile_t, filt_len)  inverse (pre-overlap-add) frames
        # x_ref:     (tile_t, filt_len)     VMEM staging for the frame tile
        tt = pl.program_id(1)
        row0 = pl.multiple_of(tt * tile_t, tile_t)             # 8-aligned start
        chunk = audio_ref[0, pl.ds(row0, L), :]                 # (L, hop)
        # build the frame tile: frame i, taps [k*hop:(k+1)*hop] == audio row i+k
        for k in range(k_frames):                               # static, k_frames = 4
            x_ref[:, k * hop:(k + 1) * hop] = chunk[k:k + tile_t, :]
        # fused transform + inverse: frames_inv = frames @ (Wf.T @ Wi)
        out_ref[0] = jnp.dot(x_ref[...], w_ref[...],
                             preferred_element_type=jnp.float32)

    return pl.pallas_call(
        kernel,
        out_shape=jax.ShapeDtypeStruct((B, T_pad, filt_len), jnp.float32),
        grid=(B, n_tiles),
        in_specs=[
            pl.BlockSpec((1, S, hop), lambda b, t: (b, 0, 0)),            # resident audio row
            pl.BlockSpec((filt_len, filt_len), lambda b, t: (0, 0)),      # resident basis
        ],
        out_specs=pl.BlockSpec((1, tile_t, filt_len), lambda b, t: (b, t, 0)),
        scratch_shapes=[pltpu.VMEM((tile_t, filt_len), jnp.float32)],
        compiler_params=pltpu.CompilerParams(
            dimension_semantics=("parallel", "parallel"),
            vmem_limit_bytes=64 * 1024 * 1024),
    )


# ----------------------- forward (transform + inverse) -----------------------
def stft_reconstruct(x, forward_basis, inverse_basis, cutoff,
                     filter_length=FILTER_LENGTH, hop=HOP_LENGTH,
                     win_length=WIN_LENGTH, tile_t=256):
    B, N = x.shape
    filt_len = filter_length
    pad = filt_len // 2
    assert filt_len % hop == 0, "filter_length must be a multiple of hop_length"
    k_frames = filt_len // hop

    # --- framing setup (reflect pad == F.pad(..., mode='reflect')) ---
    xp = jnp.pad(x.astype(jnp.float32), ((0, 0), (pad, pad)), mode="reflect")
    n_padded = N + 2 * pad
    T = (n_padded - filt_len) // hop + 1           # frames produced by conv1d

    # frame-axis tiling (multiple of 8 sublanes)
    tile_t = max(8, min(_round_up(int(tile_t), 8), _round_up(T, 8)))
    T_pad = _round_up(T, tile_t)
    halo = _round_up(tile_t + k_frames - 1, 8) - tile_t
    S = _round_up(max(T_pad + halo, -(-n_padded // hop)), 8)
    # padded audio laid out (B, S, hop) with hop on the lane axis; the zero tail
    # only feeds the discarded frames >= T.
    # TODO(synk): for very long clips (S*hop*4 bytes >> a few MiB per batch row)
    # the audio row should also be tiled instead of kept fully VMEM-resident.
    xp = jnp.pad(xp, ((0, 0), (0, S * hop - n_padded)))
    audio_rows = xp.reshape(B, S, hop)

    # --- composed basis: mag/phase round trip is identity, so
    #     transform->inverse == frames @ (forward_basis.T @ inverse_basis) ---
    W = (forward_basis.astype(np.float64).T
         @ inverse_basis.astype(np.float64)).astype(np.float32)   # (F, F)
    # TODO(synk): optionally cast audio/basis to bfloat16 (f32 accumulation) on
    # v6e/v7x if downstream tolerance allows.

    # --- fused transform + inverse in one lane-dense MXU matmul per tile ---
    call = _make_stft_recon_call(B, S, T_pad, tile_t, hop, filt_len)
    frames_inv = call(audio_rows, jnp.asarray(W))[:, :T, :]

    # --- overlap-add == conv_transpose1d(stride=hop), single output channel ---
    fr = frames_inv.reshape(B, T, k_frames, hop)
    y = jnp.zeros((B, T + k_frames - 1, hop), jnp.float32)
    for k in range(k_frames):
        y = y.at[:, k:k + T].add(fr[:, :, k, :])
    y = y.reshape(B, (T + k_frames - 1) * hop)     # == (T-1)*hop + filt_len

    # --- window-sumsquare correction + hop-ratio scale folded into ONE gain ---
    wsum = window_sumsquare(T, hop, win_length, filt_len)
    tiny = np.finfo(np.float32).tiny
    scale = float(filt_len) / hop
    gain = np.where(wsum > tiny, scale / wsum, scale).astype(np.float32)
    y = y * jnp.asarray(gain)[None, :]

    # trim filter_length/2 from both ends
    y = y[:, pad:]
    y = y[:, :y.shape[1] - pad]
    return y[:, None, :]                           # (B, 1, N)


# ----------------------- main -------------------------------------------------
if __name__ == "__main__":
    key = jax.random.PRNGKey(0)
    B, N = 2, 512
    x = jax.random.normal(key, (B, N), dtype=jnp.float32)

    fwd_b, inv_b, cutoff = build_bases(FILTER_LENGTH, HOP_LENGTH, WIN_LENGTH, WINDOW)
    # tile_t=8 keeps the tiny demo multi-tile: grid = (B=2, n_tiles=2) = 4 blocks.
    recon = stft_reconstruct(x, fwd_b, inv_b, cutoff, tile_t=8)
    recon = jax.block_until_ready(recon)

    assert recon.shape == (B, 1, N), recon.shape
    assert recon.dtype == jnp.float32
    print("KERNEL_OK")
</pallas_src>

<mosaic_0001>
module attributes {stable_mosaic.version = 11 : i64} {
  func.func @kernel(%arg0: i32, %arg1: i32, %arg2: memref<1x24x64xf32, #tpu.memory_space<vmem>>, %arg3: memref<256x256xf32, #tpu.memory_space<vmem>>, %arg4: memref<1x8x256xf32, #tpu.memory_space<vmem>>, %arg5: memref<8x256xf32, #tpu.memory_space<vmem>>) attributes {dimension_semantics = [#tpu.dimension_semantics<parallel>, #tpu.dimension_semantics<parallel>], iteration_bounds = array<i64: 2, 2>, scalar_prefetch = 0 : i64, scratch_operands = 1 : i64, tpu.core_type = #tpu.core_type<tc>, window_params = [{transform_indices = @transform_0, window_bounds = array<i64: 1, 24, 64>}, {pipeline_mode = #tpu.pipeline_mode<synchronous>, transform_indices = @transform_1, window_bounds = array<i64: 256, 256>}, {transform_indices = @transform_2, window_bounds = array<i64: 1, 8, 256>}]} {
    %c8_i32 = arith.constant 8 : i32
    %0 = arith.muli %arg1, %c8_i32 : i32
    %1 = tpu.assume_multiple %0, 8 : i32
    %c0 = arith.constant 0 : index
    %2 = arith.index_cast %1 : i32 to index
    %c0_0 = arith.constant 0 : index
    %3 = vector.load %arg2[%c0, %2, %c0_0] : memref<1x24x64xf32, #tpu.memory_space<vmem>>, vector<1x16x64xf32>
    %4 = vector.shape_cast %3 : vector<1x16x64xf32> to vector<16x64xf32>
    %5 = vector.extract_strided_slice %4 {offsets = [0, 0], sizes = [8, 64], strides = [1, 1]} : vector<16x64xf32> to vector<8x64xf32>
    %c0_1 = arith.constant 0 : index
    %c0_2 = arith.constant 0 : index
    %6 = vector.load %arg5[%c0_1, %c0_2] : memref<8x256xf32, #tpu.memory_space<vmem>>, vector<8x64xf32>
    tpu.vector_store %arg5[%c0_1, %c0_2], %5 {strides = array<i32>} : memref<8x256xf32, #tpu.memory_space<vmem>>, vector<8x64xf32>,
    %7 = vector.extract_strided_slice %4 {offsets = [1, 0], sizes = [8, 64], strides = [1, 1]} : vector<16x64xf32> to vector<8x64xf32>
    %c0_3 = arith.constant 0 : index
    %c64 = arith.constant 64 : index
    %8 = vector.load %arg5[%c0_3, %c64] : memref<8x256xf32, #tpu.memory_space<vmem>>, vector<8x64xf32>
    tpu.vector_store %arg5[%c0_3, %c64], %7 {strides = array<i32>} : memref<8x256xf32, #tpu.memory_space<vmem>>, vector<8x64xf32>,
    %9 = vector.extract_strided_slice %4 {offsets = [2, 0], sizes = [8, 64], strides = [1, 1]} : vector<16x64xf32> to vector<8x64xf32>
    %c0_4 = arith.constant 0 : index
    %c128 = arith.constant 128 : index
    %10 = vector.load %arg5[%c0_4, %c128] : memref<8x256xf32, #tpu.memory_space<vmem>>, vector<8x64xf32>
    tpu.vector_store %arg5[%c0_4, %c128], %9 {strides = array<i32>} : memref<8x256xf32, #tpu.memory_space<vmem>>, vector<8x64xf32>,
    %11 = vector.extract_strided_slice %4 {offsets = [3, 0], sizes = [8, 64], strides = [1, 1]} : vector<16x64xf32> to vector<8x64xf32>
    %c0_5 = arith.constant 0 : index
    %c192 = arith.constant 192 : index
    %12 = vector.load %arg5[%c0_5, %c192] : memref<8x256xf32, #tpu.memory_space<vmem>>, vector<8x64xf32>
    tpu.vector_store %arg5[%c0_5, %c192], %11 {strides = array<i32>} : memref<8x256xf32, #tpu.memory_space<vmem>>, vector<8x64xf32>,
    %c0_6 = arith.constant 0 : index
    %c0_7 = arith.constant 0 : index
    %13 = vector.load %arg5[%c0_6, %c0_7] : memref<8x256xf32, #tpu.memory_space<vmem>>, vector<8x256xf32>
    %c0_8 = arith.constant 0 : index
    %c0_9 = arith.constant 0 : index
    %14 = vector.load %arg3[%c0_8, %c0_9] : memref<256x256xf32, #tpu.memory_space<vmem>>, vector<256x256xf32>
    %cst = arith.constant dense<0.000000e+00> : vector<8x256xf32>
    %15 = tpu.matmul %13, %14, %cst {dimension_numbers = #tpu.dot_dimension_numbers<[1], [0], [0], [1], [0, 0, 1, 1], [], []>} : vector<8x256xf32>, vector<256x256xf32>, vector<8x256xf32> -> vector<8x256xf32>
    %c0_10 = arith.constant 0 : index
    %c0_11 = arith.constant 0 : index
    %c0_12 = arith.constant 0 : index
    %16 = vector.load %arg4[%c0_10, %c0_11, %c0_12] : memref<1x8x256xf32, #tpu.memory_space<vmem>>, vector<1x8x256xf32>
    %17 = vector.shape_cast %16 : vector<1x8x256xf32> to vector<8x256xf32>
    %18 = vector.shape_cast %15 : vector<8x256xf32> to vector<1x8x256xf32>
    tpu.vector_store %arg4[%c0_10, %c0_11, %c0_12], %18 {strides = array<i32>} : memref<1x8x256xf32, #tpu.memory_space<vmem>>, vector<1x8x256xf32>,
    return
  }
  func.func @transform_0(%arg0: i32, %arg1: i32) -> (i32, i32, i32) {
    %c0_i32 = arith.constant 0 : i32
    %c0_i32_0 = arith.constant 0 : i32
    %c0_i32_1 = arith.constant 0 : i32
    return %arg0, %c0_i32, %c0_i32_0 : i32, i32, i32
  }
  func.func @transform_1(%arg0: i32, %arg1: i32) -> (i32, i32) {
    %c0_i32 = arith.constant 0 : i32
    %c0_i32_0 = arith.constant 0 : i32
    %c0_i32_1 = arith.constant 0 : i32
    return %c0_i32, %c0_i32_0 : i32, i32
  }
  func.func @transform_2(%arg0: i32, %arg1: i32) -> (i32, i32, i32) {
    %c0_i32 = arith.constant 0 : i32
    %c0_i32_0 = arith.constant 0 : i32
    return %arg0, %arg1, %c0_i32 : i32, i32, i32
  }
}

</mosaic_0001>

<llo_original>
// kernel: tpu_custom_call.1
$region0: #{tpu_custom_call.1}
  #allocation0 [shape = 'u32[]', space=smem, size = 0x4, offset = 0x4, fixed_abs, tag = 'smem constant byte address 0x4 - core index']
  #allocation1 [shape = 'u32[144,128]{1,0:T(1,128)}', space=vmem, size = 0x12000, scoped, tag = 'internal scratch']
  #allocation2 [shape = 'f32[8,256]{1,0:T(8,128)}', space=vmem, size = 0x2000, scoped, tag = 'scratch operand']
  %s0 = inlined_call_operand.hbm [shape: f32[2,24,64], index: 0, kind: input, shape index: {}]
  %s1 = inlined_call_operand.hbm [shape: f32[256,256], index: 1, kind: input, shape index: {}]
  %s2 = inlined_call_operand.hbm [shape: f32[2,16,256], index: 2, kind: output, shape index: {}]
  %s3 = sld [smem:[#allocation0]]
  $region49: #{tpu_custom_call.1} parent=0
    _
  %s5 = ssub.s32 1, %s3
  %s6 = scalar_select 0, %s5, %s3
  $region1: #{tpu_custom_call.1} parent=0
    #allocation3 [shape = 'u8[24576]{0}', space=vmem, size = 0x6000, scoped, tag = 'input window, operand 0']
    #allocation4 [shape = 's32[2]{0}', space=sflag, size = 0x8, scoped, tag = 'scoped memory for tpu_custom_call.1']
    #allocation5 [shape = 's32[2]{0}', space=sflag, size = 0x8, scoped, tag = 'scoped memory for tpu_custom_call.1']
    #allocation6 [shape = 'u8[262144]{0}', space=vmem, size = 0x40000, scoped, tag = 'input window, operand 1, single buffered']
    #allocation7 [shape = 's32[1]{0}', space=sflag, size = 0x4, scoped, tag = 'scoped memory for tpu_custom_call.1']
    #allocation8 [shape = 'u8[16384]{0}', space=vmem, size = 0x4000, scoped, tag = 'output window, operand 0']
    %7 = vsyncpa [#allocation4], 0
    %s8 = scalar_lea.sflag [#allocation4], 1
    %9 = vsyncpa %s8, 0
    %10 = vsyncpa [#allocation7], 0
    %11 = vsyncpa [#allocation5], 0
    %s12 = scalar_lea.sflag [#allocation5], 1
    %13 = vsyncpa %s12, 0
    loop: start=0, step=1, limit=6
    $region2: #{tpu_custom_call.1} parent=1 // loop_pre_header
      _
    $region3: #{tpu_custom_call.1} parent=1 // loop_header
      %s15 = sphi 0, %s19
      %p16 = scmp.ge.s32.totalorder %s15, 6
      %s22 = sphi 0, %s34
      %s23 = sphi 0, %s30
      %s24 = sphi 0, %s22
      %s25 = sphi 0, %s23
      %s26 = sphi 0, %s24
      %s27 = sphi 0, %s25
      %s37 = sphi 0, %s39
      %s40 = sphi 0, %s37
      %s41 = sphi 0, %s40
      %s57 = sphi 0, %s41
      %s61 = sphi 0, %s61
      %s63 = sphi 0, %s61
      %s64 = sphi 0, %s63
      %s78 = sphi 0, %s64
      %s86 = sphi 0, %s88
      %s89 = sphi 0, %s86
      %s90 = sphi 0, %s89
      %s106 = sphi 0, %s90
    $region4: #{tpu_custom_call.1} parent=1 // loop_header_branch
      %18 = sbr.rel (%p16) target = $region8
    $region5: #{tpu_custom_call.1} parent=1 // loop_body
      %s20 = ssub.s32 %s15, 1
      %s21 = ssub.s32 %s15, 2
      %s28 = sadd.s32 1, %s23
      %p29 = scmp.ge.s32.totalorder %s28, 2
      %s30 = scalar_select %p29, 0, %s28
      %s31 = sadd.s32 1, %s22
      %s32 = scalar_select %p29, %s31, %s22
      %p33 = scmp.ge.s32.totalorder %s32, 2
      %s34 = scalar_select %p33, 0, %s32
      %s35 = ssub.s32 %s22, %s34
      %p36 = scmp.eq.s32.totalorder %s35, 0
      %s38 = sadd.s32 %s37, 1
      %s39 = scalar_select %p36, %s37, %s38
      %p42 = pneg %p36
      %p43 = scmp.eq.s32.totalorder %s15, 3
      %p44 = por %p42, %p43
      %p45 = scmp.ne.s32.totalorder %s37, %s40
      %p46 = scmp.eq.s32.totalorder %s15, 0
      %p47 = por %p45, %p46
      %p48 = scmp.ne.s32.totalorder %s37, %s40
      %p49 = scmp.eq.s32.totalorder %s20, 3
      %p50 = por %p48, %p49
      %p51 = scmp.ne.s32.totalorder %s40, %s41
      %p52 = scmp.eq.s32.totalorder %s20, 0
      %p53 = por %p51, %p52
      %p54 = scmp.ne.s32.totalorder %s40, %s41
      %p55 = scmp.eq.s32.totalorder %s21, 3
      %p56 = por %p54, %p55
      %p58 = scmp.ne.s32.totalorder %s41, %s57
      %p59 = scmp.eq.s32.totalorder %s21, 0
      %p60 = por %p58, %p59
      %s62 = sadd.s32 %s61, 1
      %p65 = scmp.eq.s32.totalorder %s15, 3
      %p66 = scmp.ne.s32.totalorder %s61, %s63
      %p67 = scmp.eq.s32.totalorder %s15, 0
      %p68 = por %p66, %p67
      %p69 = scmp.ne.s32.totalorder %s61, %s63
      %p70 = scmp.eq.s32.totalorder %s20, 3
      %p71 = por %p69, %p70
      %p72 = scmp.ne.s32.totalorder %s63, %s64
      %p73 = scmp.eq.s32.totalorder %s20, 0
      %p74 = por %p72, %p73
      %p75 = scmp.ne.s32.totalorder %s63, %s64
      %p76 = scmp.eq.s32.totalorder %s21, 3
      %p77 = por %p75, %p76
      %p79 = scmp.ne.s32.totalorder %s64, %s78
      %p80 = scmp.eq.s32.totalorder %s21, 0
      %p81 = por %p79, %p80
      %s82 = ssub.s32 %s22, %s34
      %s83 = ssub.s32 %s23, %s30
      %s84 = sor.u32 %s82, %s83
      %p85 = scmp.eq.s32.totalorder %s84, 0
      %s87 = sadd.s32 %s86, 1
      %s88 = scalar_select %p85, %s86, %s87
      %p91 = pneg %p85
      %p92 = scmp.eq.s32.totalorder %s15, 3
      %p93 = por %p91, %p92
      %p94 = scmp.ne.s32.totalorder %s86, %s89
      %p95 = scmp.eq.s32.totalorder %s15, 0
      %p96 = por %p94, %p95
      %p97 = scmp.ne.s32.totalorder %s86, %s89
      %p98 = scmp.eq.s32.totalorder %s20, 3
      %p99 = por %p97, %p98
      %p100 = scmp.ne.s32.totalorder %s89, %s90
      %p101 = scmp.eq.s32.totalorder %s20, 0
      %p102 = por %p100, %p101
      %p103 = scmp.ne.s32.totalorder %s89, %s90
      %p104 = scmp.eq.s32.totalorder %s21, 3
      %p105 = por %p103, %p104
      %p107 = scmp.ne.s32.totalorder %s90, %s106
      %p108 = scmp.eq.s32.totalorder %s21, 0
      %p109 = por %p107, %p108
      %p110 = scmp.le.s32.totalorder 1, %s15
      %p111 = scmp.lt.s32.totalorder %s15, 5
      %p112 = pnand %p110, %p111
      %p113 = pneg %p112
      // Predicated region
      $region9: #{tpu_custom_call.1} parent=5 // pred_check
        _
      $region10: #{tpu_custom_call.1} parent=5 // pred_check_branch
        %115 = sbr.rel (%p112) target = $region12
      $region11: #{tpu_custom_call.1} parent=5 // pred_region
        %s116 = ssub.s32 %s15, 1
        // Predicated region
        $region13: #{tpu_custom_call.1} parent=11 // pred_check
          %p117 = pneg %p74
        $region14: #{tpu_custom_call.1} parent=11 // pred_check_branch
          %119 = sbr.rel (%p117) target = $region16
        $region15: #{tpu_custom_call.1} parent=11 // pred_region
          %s121 = ssub.s32 8192, 8192
          %122 = vsyncadd [#allocation7], %s121
          %s123 = sshll.u32 [#allocation6], 4
          %s124 = int_to_ptr.vmem [resolvable:$true] %s123
          %129 = dma.hbm_to_vmem [thread:$0]  %s1, 8192, %s124, [#allocation7], 256, 256, 16
        $region16: #{tpu_custom_call.1} parent=11 // pred_fallthru
          _
      $region12: #{tpu_custom_call.1} parent=5 // pred_fallthru
        _
      %p130 = scmp.lt.s32.totalorder %s15, 4
      // Predicated region
      $region17: #{tpu_custom_call.1} parent=5 // pred_check
        %p131 = pneg %p130
      $region18: #{tpu_custom_call.1} parent=5 // pred_check_branch
        %133 = sbr.rel (%p131) target = $region20
      $region19: #{tpu_custom_call.1} parent=5 // pred_region
        // Predicated region
        $region21: #{tpu_custom_call.1} parent=19 // pred_check
          %p134 = pneg %p47
        $region22: #{tpu_custom_call.1} parent=19 // pred_check_branch
          %136 = sbr.rel (%p134) target = $region24
        $region23: #{tpu_custom_call.1} parent=19 // pred_region
          %s137 = sand.u32 %s37, 1
          %s138 = scalar_lea.sflag [#allocation4], %s137
          %s139 = sand.u32 %s37, 1
          %s140 = smul.addr %s139, 24
          %s141 = scalar_lea.vmem [#allocation3], %s140
          %s143 = ssub.s32 384, 384
          %144 = vsyncadd %s138, %s143
          %s145 = smul.addr %s22, 3
          %s146 = smul.addr %s145, 128
          %s147 = scalar_lea.hbm %s0, %s146
          %s148 = sshll.u32 %s141, 4
          %s149 = int_to_ptr.vmem [resolvable:$true] %s148
          %154 = dma.hbm_to_vmem [thread:$0]  %s147, 384, %s149, %s138, 128, 128, 8
        $region24: #{tpu_custom_call.1} parent=19 // pred_fallthru
          _
      $region20: #{tpu_custom_call.1} parent=5 // pred_fallthru
        _
      %p155 = scmp.le.s32.totalorder 1, %s15
      %p156 = scmp.lt.s32.totalorder %s15, 5
      %p157 = pnand %p155, %p156
      %p158 = pneg %p157
      // Predicated region
      $region25: #{tpu_custom_call.1} parent=5 // pred_check
        _
      $region26: #{tpu_custom_call.1} parent=5 // pred_check_branch
        %160 = sbr.rel (%p157) target = $region28
      $region27: #{tpu_custom_call.1} parent=5 // pred_region
        %s161 = ssub.s32 %s15, 1
        %s162 = sand.u32 %s40, 1
        %s163 = scalar_lea.sflag [#allocation4], %s162
        %s164 = sand.u32 %s40, 1
        %s165 = smul.addr %s164, 24
        %s166 = scalar_lea.vmem [#allocation3], %s165
        // Predicated region
        $region29: #{tpu_custom_call.1} parent=27 // pred_check
          %p167 = pneg %p53
        $region30: #{tpu_custom_call.1} parent=27 // pred_check_branch
          %169 = sbr.rel (%p167) target = $region32
        $region31: #{tpu_custom_call.1} parent=27 // pred_region
          %170 = dma.done %s163, 384
        $region32: #{tpu_custom_call.1} parent=27 // pred_fallthru
          _
        // Predicated region
        $region33: #{tpu_custom_call.1} parent=27 // pred_check
          %p171 = pneg %p74
        $region34: #{tpu_custom_call.1} parent=27 // pred_check_branch
          %173 = sbr.rel (%p171) target = $region36
        $region35: #{tpu_custom_call.1} parent=27 // pred_region
          %174 = dma.done [#allocation7], 8192
        $region36: #{tpu_custom_call.1} parent=27 // pred_fallthru
          _
        %s175 = sand.u32 %s40, 1
        %s176 = scalar_lea.sflag [#allocation4], %s175
        %s177 = sand.u32 %s40, 1
        %s178 = smul.addr %s177, 24
        %s179 = scalar_lea.vmem [#allocation3], %s178
        %p180 = pneg %p53
        %p181 = pneg %p50
        %p182 = pneg %p74
        %p183 = pneg %p71
        %p184 = pneg %p102
        %p185 = pneg %p99
        %s186 = sand.u32 %s89, 1
        %s187 = scalar_lea.sflag [#allocation5], %s186
        %s188 = sand.u32 %s89, 1
        %s189 = smul.addr %s188, 16
        %s190 = scalar_lea.vmem [#allocation8], %s189
        %s191 = smul.u32 %s25, 8
        %s192 = scalar_lea.vmem %s166, %s191 [#allocation3]
        %v193 = vld [vmem:[%s192] sm:$0xff]
        %v194 = vld [vmem:[%s192 + $0x8] sm:$0xff]
        %vm195 = vcmask 523264
        %196 = vst.msk [vmem:[#allocation2] sm:$0xff] %vm195, %v193
        %vm199 = vcmask 1046528
        %v200 = vrot.slane %v193, 1
        %v201 = vrot.slane %v194, 1
        %v202 = vsel %vm199, %v200, %v201
        %203 = vrot.lane.b32.xlu0 %v202, 64
        %v204 = vpop.permute.xlu0 %203
        %vm206 = vcmask 1048064
        %207 = vst.msk [vmem:[#allocation2] sm:$0xff] %vm206, %v204
        %vm208 = vcmask 1045504
        %v209 = vrot.slane %v193, 2
        %v210 = vrot.slane %v194, 2
        %v211 = vsel %vm208, %v209, %v210
        %213 = vst.msk [vmem:[#allocation2 + $0x8] sm:$0xff] %vm195, %v211
        %vm214 = vcmask 1044480
        %v215 = vrot.slane %v193, 3
        %v216 = vrot.slane %v194, 3
        %v217 = vsel %vm214, %v215, %v216
        %218 = vrot.lane.b32.xlu0 %v217, 64
        %v219 = vpop.permute.xlu0 %218
        %221 = vst.msk [vmem:[#allocation2 + $0x8] sm:$0xff] %vm206, %v219
        %v222 = vld [vmem:[#allocation2] sm:$0xff]
        %v223 = vld [vmem:[#allocation2 + $0x8] sm:$0xff]
        %v224 = vld [vmem:[#allocation6] sm:$0xff]
        %v225 = vld [vmem:[#allocation6 + $0x8] sm:$0xff]
        %v226 = vld [vmem:[#allocation6 + $0x10] sm:$0xff]
        %v227 = vld [vmem:[#allocation6 + $0x18] sm:$0xff]
        %v228 = vld [vmem:[#allocation6 + $0x20] sm:$0xff]
        %v229 = vld [vmem:[#allocation6 + $0x28] sm:$0xff]
        %v230 = vld [vmem:[#allocation6 + $0x30] sm:$0xff]
        %v231 = vld [vmem:[#allocation6 + $0x38] sm:$0xff]
        %v232 = vld [vmem:[#allocation6 + $0x40] sm:$0xff]
        %v233 = vld [vmem:[#allocation6 + $0x48] sm:$0xff]
        %v234 = vld [vmem:[#allocation6 + $0x50] sm:$0xff]
        %v235 = vld [vmem:[#allocation6 + $0x58] sm:$0xff]
        %v236 = vld [vmem:[#allocation6 + $0x60] sm:$0xff]
        %v237 = vld [vmem:[#allocation6 + $0x68] sm:$0xff]
        %v238 = vld [vmem:[#allocation6 + $0x70] sm:$0xff]
        %v239 = vld [vmem:[#allocation6 + $0x78] sm:$0xff]
        %v240 = vld [vmem:[#allocation6 + $0x80] sm:$0xff]
        %v241 = vld [vmem:[#allocation6 + $0x88] sm:$0xff]
        %v242 = vld [vmem:[#allocation6 + $0x90] sm:$0xff]
        %v243 = vld [vmem:[#allocation6 + $0x98] sm:$0xff]
        %v244 = vld [vmem:[#allocation6 + $0xa0] sm:$0xff]
        %v245 = vld [vmem:[#allocation6 + $0xa8] sm:$0xff]
        %v246 = vld [vmem:[#allocation6 + $0xb0] sm:$0xff]
        %v247 = vld [vmem:[#allocation6 + $0xb8] sm:$0xff]
        %v248 = vld [vmem:[#allocation6 + $0xc0] sm:$0xff]
        %v249 = vld [vmem:[#allocation6 + $0xc8] sm:$0xff]
        %v250 = vld [vmem:[#allocation6 + $0xd0] sm:$0xff]
        %v251 = vld [vmem:[#allocation6 + $0xd8] sm:$0xff]
        %v252 = vld [vmem:[#allocation6 + $0xe0] sm:$0xff]
        %v253 = vld [vmem:[#allocation6 + $0xe8] sm:$0xff]
        %v254 = vld [vmem:[#allocation6 + $0xf0] sm:$0xff]
        %v255 = vld [vmem:[#allocation6 + $0xf8] sm:$0xff]
        %v256 = vld [vmem:[#allocation6 + $0x100] sm:$0xff]
        %v257 = vld [vmem:[#allocation6 + $0x108] sm:$0xff]
        %v258 = vld [vmem:[#allocation6 + $0x110] sm:$0xff]
        %v259 = vld [vmem:[#allocation6 + $0x118] sm:$0xff]
        %v260 = vld [vmem:[#allocation6 + $0x120] sm:$0xff]
        %v261 = vld [vmem:[#allocation6 + $0x128] sm:$0xff]
        %v262 = vld [vmem:[#allocation6 + $0x130] sm:$0xff]
        %v263 = vld [vmem:[#allocation6 + $0x138] sm:$0xff]
        %v264 = vld [vmem:[#allocation6 + $0x140] sm:$0xff]
        %v265 = vld [vmem:[#allocation6 + $0x148] sm:$0xff]
        %v266 = vld [vmem:[#allocation6 + $0x150] sm:$0xff]
        %v267 = vld [vmem:[#allocation6 + $0x158] sm:$0xff]
        %v268 = vld [vmem:[#allocation6 + $0x160] sm:$0xff]
        %v269 = vld [vmem:[#allocation6 + $0x168] sm:$0xff]
        %v270 = vld [vmem:[#allocation6 + $0x170] sm:$0xff]
        %v271 = vld [vmem:[#allocation6 + $0x178] sm:$0xff]
        %v272 = vld [vmem:[#allocation6 + $0x180] sm:$0xff]
        %v273 = vld [vmem:[#allocation6 + $0x188] sm:$0xff]
        %v274 = vld [vmem:[#allocation6 + $0x190] sm:$0xff]
        %v275 = vld [vmem:[#allocation6 + $0x198] sm:$0xff]
        %v276 = vld [vmem:[#allocation6 + $0x1a0] sm:$0xff]
        %v277 = vld [vmem:[#allocation6 + $0x1a8] sm:$0xff]
        %v278 = vld [vmem:[#allocation6 + $0x1b0] sm:$0xff]
        %v279 = vld [vmem:[#allocation6 + $0x1b8] sm:$0xff]
        %v280 = vld [vmem:[#allocation6 + $0x1c0] sm:$0xff]
        %v281 = vld [vmem:[#allocation6 + $0x1c8] sm:$0xff]
        %v282 = vld [vmem:[#allocation6 + $0x1d0] sm:$0xff]
        %v283 = vld [vmem:[#allocation6 + $0x1d8] sm:$0xff]
        %v284 = vld [vmem:[#allocation6 + $0x1e0] sm:$0xff]
        %v285 = vld [vmem:[#allocation6 + $0x1e8] sm:$0xff]
        %v286 = vld [vmem:[#allocation6 + $0x1f0] sm:$0xff]
        %v287 = vld [vmem:[#allocation6 + $0x1f8] sm:$0xff]
        %288 = vmatprep.subr.mxu0 %v255
        %289 = vmatpush1.msra.mxu0 %v254
        %290 = vmatprep.subr.mxu0 %v253
        %291 = vmatpush1.msra.mxu0 %v252
        %292 = vmatprep.subr.mxu0 %v251
        %293 = vmatpush1.msra.mxu0 %v250
        %294 = vmatprep.subr.mxu0 %v249
        %295 = vmatpush1.msra.mxu0 %v248
        %296 = vmatprep.subr.mxu0 %v247
        %297 = vmatpush1.msra.mxu0 %v246
        %298 = vmatprep.subr.mxu0 %v245
        %299 = vmatpush1.msra.mxu0 %v244
        %300 = vmatprep.subr.mxu0 %v243
        %301 = vmatpush1.msra.mxu0 %v242
        %302 = vmatprep.subr.mxu0 %v241
        %303 = vmatpush1.msra.mxu0 %v240
        %304 = vmatprep.subr.mxu0 %v239
        %305 = vmatpush1.msra.mxu0 %v238
        %306 = vmatprep.subr.mxu0 %v237
        %307 = vmatpush1.msra.mxu0 %v236
        %308 = vmatprep.subr.mxu0 %v235
        %309 = vmatpush1.msra.mxu0 %v234
        %310 = vmatprep.subr.mxu0 %v233
        %311 = vmatpush1.msra.mxu0 %v232
        %312 = vmatprep.subr.mxu0 %v231
        %313 = vmatpush1.msra.mxu0 %v230
        %314 = vmatprep.subr.mxu0 %v229
        %315 = vmatpush1.msra.mxu0 %v228
        %316 = vmatprep.subr.mxu0 %v227
        %317 = vmatpush1.msra.mxu0 %v226
        %318 = vmatprep.subr.mxu0 %v225
        %319 = vmatpush1.msra.mxu0 %v224
        %320 = vmatprep.subr.mxu0 %v287
        %321 = vmatpush2.msra.mxu0 %v286
        %322 = vmatprep.subr.mxu0 %v285
        %323 = vmatpush2.msra.mxu0 %v284
        %324 = vmatprep.subr.mxu0 %v283
        %325 = vmatpush2.msra.mxu0 %v282
        %326 = vmatprep.subr.mxu0 %v281
        %327 = vmatpush2.msra.mxu0 %v280
        %328 = vmatprep.subr.mxu0 %v279
        %329 = vmatpush2.msra.mxu0 %v278
        %330 = vmatprep.subr.mxu0 %v277
        %331 = vmatpush2.msra.mxu0 %v276
        %332 = vmatprep.subr.mxu0 %v275
        %333 = vmatpush2.msra.mxu0 %v274
        %334 = vmatprep.subr.mxu0 %v273
        %335 = vmatpush2.msra.mxu0 %v272
        %336 = vmatprep.subr.mxu0 %v271
        %337 = vmatpush2.msra.mxu0 %v270
        %338 = vmatprep.subr.mxu0 %v269
        %339 = vmatpush2.msra.mxu0 %v268
        %340 = vmatprep.subr.mxu0 %v267
        %341 = vmatpush2.msra.mxu0 %v266
        %342 = vmatprep.subr.mxu0 %v265
        %343 = vmatpush2.msra.mxu0 %v264
        %344 = vmatprep.subr.mxu0 %v263
        %345 = vmatpush2.msra.mxu0 %v262
        %346 = vmatprep.subr.mxu0 %v261
        %347 = vmatpush2.msra.mxu0 %v260
        %348 = vmatprep.subr.mxu0 %v259
        %349 = vmatpush2.msra.mxu0 %v258
        %350 = vmatprep.subr.mxu0 %v257
        %351 = vmatpush2.msra.mxu0 %v256
        %352 = vmatprep.mubr.f32.mxu0 %v223
        %353 = vmatmul.mubr.f32.gmra.mxu0 %v222
        %v354 = vpop.f32.mrf.mxu0
        %v355 = vadd.f32 0.0, %v354
        %v356 = vpop.f32.mrf.mxu0
        %v357 = vadd.f32 0.0, %v356
        %358 = vdwg.mxu0
        %359 = vst [vmem:[%s190] sm:$0xff] %v355
        %360 = vst [vmem:[%s190 + $0x8] sm:$0xff] %v357
        %s361 = sand.u32 %s89, 1
        %s362 = scalar_lea.sflag [#allocation5], %s361
        %s363 = sand.u32 %s89, 1
        %s364 = smul.addr %s363, 16
        %s365 = scalar_lea.vmem [#allocation8], %s364
        // Predicated region
        $region37: #{tpu_custom_call.1} parent=27 // pred_check
          %p366 = pneg %p99
        $region38: #{tpu_custom_call.1} parent=27 // pred_check_branch
          %368 = sbr.rel (%p366) target = $region40
        $region39: #{tpu_custom_call.1} parent=27 // pred_region
          %s370 = ssub.s32 256, 256
          %371 = vsyncadd %s362, %s370
          %s372 = smul.addr %s25, 2
          %s373 = smul.addr %s24, 4
          %s374 = sadd.s32 %s372, %s373
          %s375 = smul.addr %s374, 128
          %s376 = scalar_lea.hbm %s2, %s375
          %s378 = sshll.u32 %s365, 4
          %s379 = int_to_ptr.vmem [resolvable:$true] %s378
          %381 = dma.vmem_to_hbm [thread:$0]  %s379, 256, %s376, %s362
        $region40: #{tpu_custom_call.1} parent=27 // pred_fallthru
          _
      $region28: #{tpu_custom_call.1} parent=5 // pred_fallthru
        _
      %p382 = scmp.le.s32.totalorder 2, %s15
      // Predicated region
      $region41: #{tpu_custom_call.1} parent=5 // pred_check
        %p383 = pneg %p382
      $region42: #{tpu_custom_call.1} parent=5 // pred_check_branch
        %385 = sbr.rel (%p383) target = $region44
      $region43: #{tpu_custom_call.1} parent=5 // pred_region
        %s386 = ssub.s32 %s15, 2
        // Predicated region
        $region45: #{tpu_custom_call.1} parent=43 // pred_check
          %p387 = pneg %p105
        $region46: #{tpu_custom_call.1} parent=43 // pred_check_branch
          %389 = sbr.rel (%p387) target = $region48
        $region47: #{tpu_custom_call.1} parent=43 // pred_region
          %s390 = sand.u32 %s90, 1
          %s391 = scalar_lea.sflag [#allocation5], %s390
          %s392 = sand.u32 %s90, 1
          %s393 = smul.addr %s392, 16
          %s394 = scalar_lea.vmem [#allocation8], %s393
          %395 = dma.done %s391, 256
        $region48: #{tpu_custom_call.1} parent=43 // pred_fallthru
          _
      $region44: #{tpu_custom_call.1} parent=5 // pred_fallthru
        _
    $region6: #{tpu_custom_call.1} parent=1 // loop_footer
      %s19 = sadd.s32 1, %s15
    $region7: #{tpu_custom_call.1} parent=1 // loop_footer_branch
      %14 = sbr.rel target = $region3
    $region8: #{tpu_custom_call.1} parent=1 // loop_exit
      _
    %396 = vsyncpa [#allocation4], 1
    %s397 = scalar_lea.sflag [#allocation4], 1
    %398 = vsyncpa %s397, 1
    %399 = vsyncpa [#allocation7], 1
    %400 = vsyncpa [#allocation5], 1
    %s401 = scalar_lea.sflag [#allocation5], 1
    %402 = vsyncpa %s401, 1

</llo_original>
